<compile_context>
chip_gen: v6e
topology: v6e:2x2x1
jax: 0.10.0
libtpu: 0.0.40
codegen_flags: <defaults>
</compile_context>

<pallas_src>
import functools

import jax
import jax.numpy as jnp
from jax.experimental import pallas as pl
from jax.experimental.pallas import tpu as pltpu


# ----------------------------- Pallas kernel ------------------------------- #

def head_top_kernel(p_ref, w_ref, b_ref, o_ref, padw_ref, *, B, Ho, Wo):
    """Fused conv(im2col matmul) + folded-BN + ReLU + 5x5/s1/p2 maxpool.

    p_ref:    (B, Ho*Wo, K)       bf16 im2col patches for B images
    w_ref:    (K, Cout)           bf16 weights with BN scale folded in
    b_ref:    (1, Cout)           f32 folded BN bias
    o_ref:    (B, Ho, Wo*Cout)    f32 pooled output (lane-dense, 512 lanes)
    padw_ref: (B, Ho, Wo+4, Cout) f32 VMEM scratch (W-padded conv activation)
    """
    K = p_ref.shape[-1]
    Cout = w_ref.shape[-1]
    HoWo = Ho * Wo

    # Conv + BN + ReLU: bf16 operands on the MXU, f32 accumulate, f32 epilogue.
    p = p_ref[...].reshape(B * HoWo, K)                    # cheap major-merge
    acc = jnp.dot(p, w_ref[...], preferred_element_type=jnp.float32)
    y = jnp.maximum(acc + b_ref[...], 0.0).reshape(B, Ho, Wo, Cout)

    # ---- separable 5x5/s1/p2 max pool (== the two 3x3/s1/p1 maxpools of
    # HeadTop; exact because PRM between them is identity). Zero padding is a
    # valid neutral element because the ReLU output is >= 0.

    # W pass: one bulk interior store + two 2-wide zero border strips (the
    # interior is fully overwritten every step, so no full-scratch zeroing).
    padw_ref[:, :, 0:2, :] = jnp.zeros((B, Ho, 2, Cout), jnp.float32)
    padw_ref[:, :, Wo + 2:Wo + 4, :] = jnp.zeros((B, Ho, 2, Cout), jnp.float32)
    padw_ref[:, :, 2:Wo + 2, :] = y
    wmax = padw_ref[:, :, 0:Wo, :]
    for dx in range(1, 5):
        wmax = jnp.maximum(wmax, padw_ref[:, :, dx:dx + Wo, :])

    # H pass fully in-register: zero rows concatenated along the untiled H
    # axis, then 4 shifted maxima (slices along a major axis are cheap).
    zrows = jnp.zeros((B, 2, Wo, Cout), jnp.float32)
    hpad = jnp.concatenate([zrows, wmax, zrows], axis=1)   # (B, Ho+4, Wo, Cout)
    out = hpad[:, 0:Ho]
    for dy in range(1, 5):
        out = jnp.maximum(out, hpad[:, dy:dy + Ho])

    # Lane-dense epilogue store: (B, Ho, Wo*Cout) -> unmasked vst + dense DMA.
    o_ref[...] = out.reshape(B, Ho, Wo * Cout)


# ------------------------------- JAX wrappers ------------------------------ #

def _im2col(x_nhwc, k, stride, pad, k_pad):
    """(N,H,W,C) -> (N, Ho*Wo, k_pad) patches, flattened K in (ky,kx,cin) order."""
    N, H, W, C = x_nhwc.shape
    xp = jnp.pad(x_nhwc, ((0, 0), (pad, pad), (pad, pad), (0, 0)))
    Ho = (H + 2 * pad - k) // stride + 1
    Wo = (W + 2 * pad - k) // stride + 1
    cols = []
    for ky in range(k):
        for kx in range(k):
            cols.append(
                xp[:, ky:ky + stride * Ho:stride, kx:kx + stride * Wo:stride, :])
    cols = jnp.stack(cols, axis=3)                         # (N, Ho, Wo, k*k, C)
    patches = cols.reshape(N, Ho * Wo, k * k * C)
    if k_pad > k * k * C:                                  # small K pad (147 -> 160)
        patches = jnp.pad(patches, ((0, 0), (0, 0), (0, k_pad - k * k * C)))
    return patches, Ho, Wo


def _pick_batch_block(n, m_per_image, target_m=256):
    """Batch-pack the matmul M dim toward ~target_m rows, but keep at least two
    'parallel' grid steps (when n >= 2) so both TensorCores on v7x get work."""
    b = max(1, min(n, max(1, target_m // max(1, m_per_image))))
    if n >= 2:
        b = max(1, min(b, n // 2))
    while n % b:                                           # divisor of n
        b -= 1
    return b


@jax.jit
def head_top_forward(x_nchw, w2d, bias):
    """HeadTop.forward: conv_bn_relu(7,2,3) -> maxpool(3,1,1) -> PRM -> maxpool(3,1,1)."""
    Kpad, Cout = w2d.shape
    N = x_nchw.shape[0]
    # NCHW -> NHWC + bf16 operand cast (module contract is NCHW in / NCHW out).
    x = jnp.transpose(x_nchw, (0, 2, 3, 1)).astype(jnp.bfloat16)
    patches, Ho, Wo = _im2col(x, k=7, stride=2, pad=3, k_pad=Kpad)
    # TODO(synk): for large inputs, assemble im2col patches inside the kernel
    # (7-row halo DMA per output-row tile) instead of materializing them in HBM.

    B = _pick_batch_block(N, Ho * Wo)
    kern = functools.partial(head_top_kernel, B=B, Ho=Ho, Wo=Wo)

    flops = 2 * N * Ho * Wo * Kpad * Cout
    # Advisory only; counts the (slightly) padded im2col patches, not raw input.
    bytes_accessed = (patches.size * 2 + w2d.size * 2 + bias.size * 4
                      + N * Ho * Wo * Cout * 4)

    pooled = pl.pallas_call(
        kern,
        out_shape=jax.ShapeDtypeStruct((N, Ho, Wo * Cout), jnp.float32),
        grid=(N // B,),
        in_specs=[
            pl.BlockSpec((B, Ho * Wo, Kpad), lambda n: (n, 0, 0)),
            pl.BlockSpec((Kpad, Cout), lambda n: (0, 0)),   # weights stay resident
            pl.BlockSpec((1, Cout), lambda n: (0, 0)),      # bias stays resident
        ],
        out_specs=pl.BlockSpec((B, Ho, Wo * Cout), lambda n: (n, 0, 0)),
        scratch_shapes=[pltpu.VMEM((B, Ho, Wo + 4, Cout), jnp.float32)],
        compiler_params=pltpu.CompilerParams(
            dimension_semantics=("parallel",)),             # both TCs on v7x
        cost_estimate=pl.CostEstimate(
            flops=flops, transcendentals=0, bytes_accessed=bytes_accessed),
    )(patches, w2d, bias)

    pooled = pooled.reshape(N, Ho, Wo, Cout)
    # TODO(synk): PRM(out_ch, out_ch, ...) definition is not provided in the
    # source snippet; it is treated as identity (the 5x5-pool fusion above is
    # only valid under that assumption).
    # NHWC -> NCHW to match the PyTorch module; keep NHWC if the consumer
    # tolerates it to save one HBM round trip of the pooled tensor.
    return jnp.transpose(pooled, (0, 3, 1, 2))


# ------------------------------ Param building ----------------------------- #

def make_params(key, in_ch, out_ch, k=7):
    k1, k2, k3, k4, k5 = jax.random.split(key, 5)
    w_hwio = jax.random.normal(k1, (k, k, in_ch, out_ch), jnp.float32) * 0.05
    gamma = 1.0 + 0.1 * jax.random.normal(k2, (out_ch,), jnp.float32)
    beta = 0.1 * jax.random.normal(k3, (out_ch,), jnp.float32)
    rmean = 0.1 * jax.random.normal(k4, (out_ch,), jnp.float32)
    rvar = jax.nn.softplus(jax.random.normal(k5, (out_ch,), jnp.float32)) + 0.5
    eps = 1e-5

    # Fold inference BatchNorm into the conv weight and a single bias:
    #   BN(conv(x)) = conv(x) * scale + bias,   scale = gamma / sqrt(var + eps)
    scale = gamma / jnp.sqrt(rvar + eps)
    bias = (beta - rmean * scale).reshape(1, out_ch).astype(jnp.float32)
    w2d = w_hwio.reshape(k * k * in_ch, out_ch) * scale[None, :]   # (ky,kx,cin) order

    # Pad K only to a multiple of 16 (147 -> 160, bf16 sublane pair friendly);
    # Mosaic pads the lane layout in VMEM, so HBM patch bytes stay ~1.1x raw
    # instead of the previous 1.74x (pad to 256).
    K = k * k * in_ch
    Kpad = -(-K // 16) * 16
    w2d = jnp.pad(w2d, ((0, Kpad - K), (0, 0))).astype(jnp.bfloat16)

    return {"w2d": w2d, "bias": bias,
            # f32 originals kept only for the pure-JAX reference check.
            "w_hwio": w_hwio, "gamma": gamma, "beta": beta,
            "rmean": rmean, "rvar": rvar, "eps": eps}


# --------------------------- Pure-JAX reference ----------------------------- #

def reference_forward(x_nchw, p):
    """Ground-truth f32 path (XLA conv / reduce_window), two separate 3x3 pools."""
    w_oihw = jnp.transpose(p["w_hwio"], (3, 2, 0, 1))
    y = jax.lax.conv_general_dilated(
        x_nchw, w_oihw, window_strides=(2, 2), padding=((3, 3), (3, 3)),
        dimension_numbers=("NCHW", "OIHW", "NCHW"))
    inv_std = 1.0 / jnp.sqrt(p["rvar"] + p["eps"])
    y = (y - p["rmean"][None, :, None, None]) * inv_std[None, :, None, None]
    y = y * p["gamma"][None, :, None, None] + p["beta"][None, :, None, None]
    y = jnp.maximum(y, 0.0)

    def mp(z):
        return jax.lax.reduce_window(
            z, -jnp.inf, jax.lax.max,
            window_dimensions=(1, 1, 3, 3), window_strides=(1, 1, 1, 1),
            padding=((0, 0), (0, 0), (1, 1), (1, 1)))

    y = mp(y)
    # PRM treated as identity (see TODO above).
    y = mp(y)
    return y


# ---------------------------------- Main ----------------------------------- #

if __name__ == "__main__":
    key = jax.random.PRNGKey(0)
    kx, kp = jax.random.split(key)

    # HeadTop defaults: in_ch=3, out_ch=64; 16x16 input -> 8x8 feature map.
    # batch=4 so the batch-packed grid still has 2 'parallel' steps (B=2).
    N, Cin, H, W = 4, 3, 16, 16
    Cout = 64
    x = jax.random.normal(kx, (N, Cin, H, W), jnp.float32)
    params = make_params(kp, Cin, Cout)

    out = jax.block_until_ready(head_top_forward(x, params["w2d"], params["bias"]))
    ref = jax.block_until_ready(reference_forward(x, params))

    assert out.shape == (N, Cout, H // 2, W // 2), out.shape
    assert bool(jnp.all(jnp.isfinite(out)))
    # bf16 matmul operands vs. the pure-f32 XLA reference -> loose tolerance.
    max_err = float(jnp.max(jnp.abs(out - ref)))
    assert bool(jnp.allclose(out, ref, rtol=3e-2, atol=3e-2)), max_err

    print("KERNEL_OK")
</pallas_src>

<mosaic_0001>
module attributes {stable_mosaic.version = 11 : i64} {
  func.func @head_top_kernel(%arg0: i32, %arg1: memref<2x64x160xbf16, #tpu.memory_space<vmem>>, %arg2: memref<160x64xbf16, #tpu.memory_space<vmem>>, %arg3: memref<1x64xf32, #tpu.memory_space<vmem>>, %arg4: memref<2x8x512xf32, #tpu.memory_space<vmem>>, %arg5: memref<2x8x12x64xf32, #tpu.memory_space<vmem>>) attributes {dimension_semantics = [#tpu.dimension_semantics<parallel>], iteration_bounds = array<i64: 2>, scalar_prefetch = 0 : i64, scratch_operands = 1 : i64, tpu.core_type = #tpu.core_type<tc>, window_params = [{transform_indices = @transform_0, window_bounds = array<i64: 2, 64, 160>}, {pipeline_mode = #tpu.pipeline_mode<synchronous>, transform_indices = @transform_1, window_bounds = array<i64: 160, 64>}, {pipeline_mode = #tpu.pipeline_mode<synchronous>, transform_indices = @transform_2, window_bounds = array<i64: 1, 64>}, {transform_indices = @transform_3, window_bounds = array<i64: 2, 8, 512>}]} {
    %c0 = arith.constant 0 : index
    %c0_0 = arith.constant 0 : index
    %c0_1 = arith.constant 0 : index
    %0 = vector.load %arg1[%c0, %c0_0, %c0_1] : memref<2x64x160xbf16, #tpu.memory_space<vmem>>, vector<2x64x160xbf16>
    %1 = vector.shape_cast %0 : vector<2x64x160xbf16> to vector<128x160xbf16>
    %c0_2 = arith.constant 0 : index
    %c0_3 = arith.constant 0 : index
    %2 = vector.load %arg2[%c0_2, %c0_3] : memref<160x64xbf16, #tpu.memory_space<vmem>>, vector<160x64xbf16>
    %cst = arith.constant dense<0.000000e+00> : vector<128x64xf32>
    %3 = tpu.matmul %1, %2, %cst {dimension_numbers = #tpu.dot_dimension_numbers<[1], [0], [0], [1], [0, 0, 1, 1], [], []>} : vector<128x160xbf16>, vector<160x64xbf16>, vector<128x64xf32> -> vector<128x64xf32>
    %c0_4 = arith.constant 0 : index
    %c0_5 = arith.constant 0 : index
    %4 = vector.load %arg3[%c0_4, %c0_5] : memref<1x64xf32, #tpu.memory_space<vmem>>, vector<1x64xf32>
    %5 = vector.broadcast %4 : vector<1x64xf32> to vector<128x64xf32>
    %6 = arith.addf %3, %5 : vector<128x64xf32>
    %cst_6 = arith.constant 0.000000e+00 : f32
    %7 = vector.broadcast %cst_6 : f32 to vector<128x64xf32>
    %8 = arith.maximumf %6, %7 : vector<128x64xf32>
    %9 = vector.shape_cast %8 : vector<128x64xf32> to vector<2x8x8x64xf32>
    %cst_7 = arith.constant 0.000000e+00 : f32
    %10 = vector.broadcast %cst_7 : f32 to vector<2x8x2x64xf32>
    %c0_8 = arith.constant 0 : index
    %c0_9 = arith.constant 0 : index
    %c0_10 = arith.constant 0 : index
    %c0_11 = arith.constant 0 : index
    %11 = vector.load %arg5[%c0_8, %c0_9, %c0_10, %c0_11] : memref<2x8x12x64xf32, #tpu.memory_space<vmem>>, vector<2x8x2x64xf32>
    tpu.vector_store %arg5[%c0_8, %c0_9, %c0_10, %c0_11], %10 {strides = array<i32>} : memref<2x8x12x64xf32, #tpu.memory_space<vmem>>, vector<2x8x2x64xf32>,
    %cst_12 = arith.constant 0.000000e+00 : f32
    %12 = vector.broadcast %cst_12 : f32 to vector<2x8x2x64xf32>
    %c0_13 = arith.constant 0 : index
    %c0_14 = arith.constant 0 : index
    %c10 = arith.constant 10 : index
    %c0_15 = arith.constant 0 : index
    %13 = vector.load %arg5[%c0_13, %c0_14, %c10, %c0_15] : memref<2x8x12x64xf32, #tpu.memory_space<vmem>>, vector<2x8x2x64xf32>
    tpu.vector_store %arg5[%c0_13, %c0_14, %c10, %c0_15], %12 {strides = array<i32>} : memref<2x8x12x64xf32, #tpu.memory_space<vmem>>, vector<2x8x2x64xf32>,
    %c0_16 = arith.constant 0 : index
    %c0_17 = arith.constant 0 : index
    %c2 = arith.constant 2 : index
    %c0_18 = arith.constant 0 : index
    %14 = vector.load %arg5[%c0_16, %c0_17, %c2, %c0_18] : memref<2x8x12x64xf32, #tpu.memory_space<vmem>>, vector<2x8x8x64xf32>
    tpu.vector_store %arg5[%c0_16, %c0_17, %c2, %c0_18], %9 {strides = array<i32>} : memref<2x8x12x64xf32, #tpu.memory_space<vmem>>, vector<2x8x8x64xf32>,
    %c0_19 = arith.constant 0 : index
    %c0_20 = arith.constant 0 : index
    %c0_21 = arith.constant 0 : index
    %c0_22 = arith.constant 0 : index
    %15 = vector.load %arg5[%c0_19, %c0_20, %c0_21, %c0_22] : memref<2x8x12x64xf32, #tpu.memory_space<vmem>>, vector<2x8x8x64xf32>
    %c0_23 = arith.constant 0 : index
    %c0_24 = arith.constant 0 : index
    %c1 = arith.constant 1 : index
    %c0_25 = arith.constant 0 : index
    %16 = vector.load %arg5[%c0_23, %c0_24, %c1, %c0_25] : memref<2x8x12x64xf32, #tpu.memory_space<vmem>>, vector<2x8x8x64xf32>
    %17 = arith.maximumf %15, %16 : vector<2x8x8x64xf32>
    %c0_26 = arith.constant 0 : index
    %c0_27 = arith.constant 0 : index
    %c2_28 = arith.constant 2 : index
    %c0_29 = arith.constant 0 : index
    %18 = vector.load %arg5[%c0_26, %c0_27, %c2_28, %c0_29] : memref<2x8x12x64xf32, #tpu.memory_space<vmem>>, vector<2x8x8x64xf32>
    %19 = arith.maximumf %17, %18 : vector<2x8x8x64xf32>
    %c0_30 = arith.constant 0 : index
    %c0_31 = arith.constant 0 : index
    %c3 = arith.constant 3 : index
    %c0_32 = arith.constant 0 : index
    %20 = vector.load %arg5[%c0_30, %c0_31, %c3, %c0_32] : memref<2x8x12x64xf32, #tpu.memory_space<vmem>>, vector<2x8x8x64xf32>
    %21 = arith.maximumf %19, %20 : vector<2x8x8x64xf32>
    %c0_33 = arith.constant 0 : index
    %c0_34 = arith.constant 0 : index
    %c4 = arith.constant 4 : index
    %c0_35 = arith.constant 0 : index
    %22 = vector.load %arg5[%c0_33, %c0_34, %c4, %c0_35] : memref<2x8x12x64xf32, #tpu.memory_space<vmem>>, vector<2x8x8x64xf32>
    %23 = arith.maximumf %21, %22 : vector<2x8x8x64xf32>
    %cst_36 = arith.constant 0.000000e+00 : f32
    %24 = vector.broadcast %cst_36 : f32 to vector<2x2x8x64xf32>
    %25 = tpu.concatenate %24, %23, %24 in 1 : vector<2x2x8x64xf32>, vector<2x8x8x64xf32>, vector<2x2x8x64xf32> -> vector<2x12x8x64xf32>
    %26 = vector.extract_strided_slice %25 {offsets = [0, 0, 0, 0], sizes = [2, 8, 8, 64], strides = [1, 1, 1, 1]} : vector<2x12x8x64xf32> to vector<2x8x8x64xf32>
    %27 = vector.extract_strided_slice %25 {offsets = [0, 1, 0, 0], sizes = [2, 8, 8, 64], strides = [1, 1, 1, 1]} : vector<2x12x8x64xf32> to vector<2x8x8x64xf32>
    %28 = arith.maximumf %26, %27 : vector<2x8x8x64xf32>
    %29 = vector.extract_strided_slice %25 {offsets = [0, 2, 0, 0], sizes = [2, 8, 8, 64], strides = [1, 1, 1, 1]} : vector<2x12x8x64xf32> to vector<2x8x8x64xf32>
    %30 = arith.maximumf %28, %29 : vector<2x8x8x64xf32>
    %31 = vector.extract_strided_slice %25 {offsets = [0, 3, 0, 0], sizes = [2, 8, 8, 64], strides = [1, 1, 1, 1]} : vector<2x12x8x64xf32> to vector<2x8x8x64xf32>
    %32 = arith.maximumf %30, %31 : vector<2x8x8x64xf32>
    %33 = vector.extract_strided_slice %25 {offsets = [0, 4, 0, 0], sizes = [2, 8, 8, 64], strides = [1, 1, 1, 1]} : vector<2x12x8x64xf32> to vector<2x8x8x64xf32>
    %34 = arith.maximumf %32, %33 : vector<2x8x8x64xf32>
    %35 = vector.shape_cast %34 : vector<2x8x8x64xf32> to vector<2x8x512xf32>
    %c0_37 = arith.constant 0 : index
    %c0_38 = arith.constant 0 : index
    %c0_39 = arith.constant 0 : index
    %36 = vector.load %arg4[%c0_37, %c0_38, %c0_39] : memref<2x8x512xf32, #tpu.memory_space<vmem>>, vector<2x8x512xf32>
    tpu.vector_store %arg4[%c0_37, %c0_38, %c0_39], %35 {strides = array<i32>} : memref<2x8x512xf32, #tpu.memory_space<vmem>>, vector<2x8x512xf32>,
    return
  }
  func.func @transform_0(%arg0: i32) -> (i32, i32, i32) {
    %c0_i32 = arith.constant 0 : i32
    %c0_i32_0 = arith.constant 0 : i32
    %c0_i32_1 = arith.constant 0 : i32
    return %arg0, %c0_i32, %c0_i32_0 : i32, i32, i32
  }
  func.func @transform_1(%arg0: i32) -> (i32, i32) {
    %c0_i32 = arith.constant 0 : i32
    %c0_i32_0 = arith.constant 0 : i32
    %c0_i32_1 = arith.constant 0 : i32
    return %c0_i32, %c0_i32_0 : i32, i32
  }
  func.func @transform_2(%arg0: i32) -> (i32, i32) {
    %c0_i32 = arith.constant 0 : i32
    %c0_i32_0 = arith.constant 0 : i32
    %c0_i32_1 = arith.constant 0 : i32
    return %c0_i32, %c0_i32_0 : i32, i32
  }
  func.func @transform_3(%arg0: i32) -> (i32, i32, i32) {
    %c0_i32 = arith.constant 0 : i32
    %c0_i32_0 = arith.constant 0 : i32
    %c0_i32_1 = arith.constant 0 : i32
    return %arg0, %c0_i32, %c0_i32_0 : i32, i32, i32
  }
}

</mosaic_0001>

<llo_original>
// kernel: head_top_forward.1
$region0: #{head_top_forward.1}
  #allocation0 [shape = 'u32[]', space=smem, size = 0x4, offset = 0x4, fixed_abs, tag = 'smem constant byte address 0x4 - core index']
  #allocation1 [shape = 'u32[144,128]{1,0:T(1,128)}', space=vmem, size = 0x12000, scoped, tag = 'internal scratch']
  #allocation2 [shape = 'f32[2,8,12,64]{3,2,1,0:T(8,128)}', space=vmem, size = 0x20000, scoped, tag = 'scratch operand']
  %s0 = inlined_call_operand.vmem [shape: bf16[4,64,160], index: 0, kind: input, shape index: {}]
  %s1 = inlined_call_operand.vmem [shape: bf16[160,64], index: 1, kind: input, shape index: {}]
  %s2 = inlined_call_operand.vmem [shape: f32[1,64], index: 2, kind: input, shape index: {}]
  %s3 = inlined_call_operand.vmem [shape: f32[4,8,512], index: 3, kind: output, shape index: {}]
  %s4 = sld [smem:[#allocation0]]
  $region45: #{head_top_forward.1} parent=0
    _
  %s6 = ssub.s32 1, %s4
  %s7 = scalar_select 0, %s6, %s4
  loop: start=0, step=1, limit=4
  $region2: #{head_top_forward.1} parent=0 // loop_pre_header
    _
  $region3: #{head_top_forward.1} parent=0 // loop_header
    %s9 = sphi 0, %s13
    %p10 = scmp.ge.s32.totalorder %s9, 4
    %s19 = sphi 0, %s21
    %s22 = sphi 0, %s19
    %s23 = sphi 0, %s22
    %s39 = sphi 0, %s23
    %s43 = sphi 0, %s43
    %s45 = sphi 0, %s43
    %s46 = sphi 0, %s45
    %s60 = sphi 0, %s46
    %s64 = sphi 0, %s64
    %s66 = sphi 0, %s64
    %s67 = sphi 0, %s66
    %s81 = sphi 0, %s67
    %s87 = sphi 0, %s89
    %s90 = sphi 0, %s87
    %s91 = sphi 0, %s90
    %s107 = sphi 0, %s91
  $region4: #{head_top_forward.1} parent=0 // loop_header_branch
    %12 = sbr.rel (%p10) target = $region8
  $region5: #{head_top_forward.1} parent=0 // loop_body
    %s14 = ssub.s32 %s9, 1
    %s15 = ssub.s32 %s9, 2
    %s16 = sadd.s32 %s9, 1
    %s17 = ssub.s32 %s9, %s16
    %p18 = scmp.eq.s32.totalorder %s17, 0
    %s20 = sadd.s32 %s19, 1
    %s21 = scalar_select %p18, %s19, %s20
    %p24 = pneg %p18
    %p25 = scmp.eq.s32.totalorder %s9, 1
    %p26 = por %p24, %p25
    %p27 = scmp.ne.s32.totalorder %s19, %s22
    %p28 = scmp.eq.s32.totalorder %s9, 0
    %p29 = por %p27, %p28
    %p30 = scmp.ne.s32.totalorder %s19, %s22
    %p31 = scmp.eq.s32.totalorder %s14, 1
    %p32 = por %p30, %p31
    %p33 = scmp.ne.s32.totalorder %s22, %s23
    %p34 = scmp.eq.s32.totalorder %s14, 0
    %p35 = por %p33, %p34
    %p36 = scmp.ne.s32.totalorder %s22, %s23
    %p37 = scmp.eq.s32.totalorder %s15, 1
    %p38 = por %p36, %p37
    %p40 = scmp.ne.s32.totalorder %s23, %s39
    %p41 = scmp.eq.s32.totalorder %s15, 0
    %p42 = por %p40, %p41
    %s44 = sadd.s32 %s43, 1
    %p47 = scmp.eq.s32.totalorder %s9, 1
    %p48 = scmp.ne.s32.totalorder %s43, %s45
    %p49 = scmp.eq.s32.totalorder %s9, 0
    %p50 = por %p48, %p49
    %p51 = scmp.ne.s32.totalorder %s43, %s45
    %p52 = scmp.eq.s32.totalorder %s14, 1
    %p53 = por %p51, %p52
    %p54 = scmp.ne.s32.totalorder %s45, %s46
    %p55 = scmp.eq.s32.totalorder %s14, 0
    %p56 = por %p54, %p55
    %p57 = scmp.ne.s32.totalorder %s45, %s46
    %p58 = scmp.eq.s32.totalorder %s15, 1
    %p59 = por %p57, %p58
    %p61 = scmp.ne.s32.totalorder %s46, %s60
    %p62 = scmp.eq.s32.totalorder %s15, 0
    %p63 = por %p61, %p62
    %s65 = sadd.s32 %s64, 1
    %p68 = scmp.eq.s32.totalorder %s9, 1
    %p69 = scmp.ne.s32.totalorder %s64, %s66
    %p70 = scmp.eq.s32.totalorder %s9, 0
    %p71 = por %p69, %p70
    %p72 = scmp.ne.s32.totalorder %s64, %s66
    %p73 = scmp.eq.s32.totalorder %s14, 1
    %p74 = por %p72, %p73
    %p75 = scmp.ne.s32.totalorder %s66, %s67
    %p76 = scmp.eq.s32.totalorder %s14, 0
    %p77 = por %p75, %p76
    %p78 = scmp.ne.s32.totalorder %s66, %s67
    %p79 = scmp.eq.s32.totalorder %s15, 1
    %p80 = por %p78, %p79
    %p82 = scmp.ne.s32.totalorder %s67, %s81
    %p83 = scmp.eq.s32.totalorder %s15, 0
    %p84 = por %p82, %p83
    %s85 = ssub.s32 %s9, %s16
    %p86 = scmp.eq.s32.totalorder %s85, 0
    %s88 = sadd.s32 %s87, 1
    %s89 = scalar_select %p86, %s87, %s88
    %p92 = pneg %p86
    %p93 = scmp.eq.s32.totalorder %s9, 1
    %p94 = por %p92, %p93
    %p95 = scmp.ne.s32.totalorder %s87, %s90
    %p96 = scmp.eq.s32.totalorder %s9, 0
    %p97 = por %p95, %p96
    %p98 = scmp.ne.s32.totalorder %s87, %s90
    %p99 = scmp.eq.s32.totalorder %s14, 1
    %p100 = por %p98, %p99
    %p101 = scmp.ne.s32.totalorder %s90, %s91
    %p102 = scmp.eq.s32.totalorder %s14, 0
    %p103 = por %p101, %p102
    %p104 = scmp.ne.s32.totalorder %s90, %s91
    %p105 = scmp.eq.s32.totalorder %s15, 1
    %p106 = por %p104, %p105
    %p108 = scmp.ne.s32.totalorder %s91, %s107
    %p109 = scmp.eq.s32.totalorder %s15, 0
    %p110 = por %p108, %p109
    %p111 = scmp.le.s32.totalorder 1, %s9
    %p112 = scmp.lt.s32.totalorder %s9, 3
    %p113 = pnand %p111, %p112
    %p114 = pneg %p113
    // Predicated region
    $region9: #{head_top_forward.1} parent=5 // pred_check
      _
    $region10: #{head_top_forward.1} parent=5 // pred_check_branch
      %116 = sbr.rel (%p113) target = $region12
    $region11: #{head_top_forward.1} parent=5 // pred_region
      %s117 = ssub.s32 %s9, 1
      // Predicated region
      $region13: #{head_top_forward.1} parent=11 // pred_check
        %p118 = pneg %p56
      $region14: #{head_top_forward.1} parent=11 // pred_check_branch
        %120 = sbr.rel (%p118) target = $region16
      $region15: #{head_top_forward.1} parent=11 // pred_region
        _
      $region16: #{head_top_forward.1} parent=11 // pred_fallthru
        _
      // Predicated region
      $region17: #{head_top_forward.1} parent=11 // pred_check
        %p121 = pneg %p77
      $region18: #{head_top_forward.1} parent=11 // pred_check_branch
        %123 = sbr.rel (%p121) target = $region20
      $region19: #{head_top_forward.1} parent=11 // pred_region
        _
      $region20: #{head_top_forward.1} parent=11 // pred_fallthru
        _
    $region12: #{head_top_forward.1} parent=5 // pred_fallthru
      _
    %p124 = scmp.lt.s32.totalorder %s9, 2
    // Predicated region
    $region21: #{head_top_forward.1} parent=5 // pred_check
      %p125 = pneg %p124
    $region22: #{head_top_forward.1} parent=5 // pred_check_branch
      %127 = sbr.rel (%p125) target = $region24
    $region23: #{head_top_forward.1} parent=5 // pred_region
      // Predicated region
      $region25: #{head_top_forward.1} parent=23 // pred_check
        %p128 = pneg %p29
      $region26: #{head_top_forward.1} parent=23 // pred_check_branch
        %130 = sbr.rel (%p128) target = $region28
      $region27: #{head_top_forward.1} parent=23 // pred_region
        %s131 = smul.u32 2, %s9
        %p132 = scmp.lt.s32.totalorder %s131, 3
        %s133 = scalar_select %p132, %s131, 3
        %s134 = smul.addr %s133, 16
        %s135 = smul.addr %s134, 4
        %s136 = scalar_lea.vmem %s0, %s135
        %s137 = smul.u32 2, %s9
      $region28: #{head_top_forward.1} parent=23 // pred_fallthru
        _
    $region24: #{head_top_forward.1} parent=5 // pred_fallthru
      _
    %p138 = scmp.le.s32.totalorder 1, %s9
    %p139 = scmp.lt.s32.totalorder %s9, 3
    %p140 = pnand %p138, %p139
    %p141 = pneg %p140
    // Predicated region
    $region29: #{head_top_forward.1} parent=5 // pred_check
      _
    $region30: #{head_top_forward.1} parent=5 // pred_check_branch
      %143 = sbr.rel (%p140) target = $region32
    $region31: #{head_top_forward.1} parent=5 // pred_region
      %s144 = ssub.s32 %s9, 1
      %s145 = smul.u32 2, %s14
      %p146 = scmp.lt.s32.totalorder %s145, 3
      %s147 = scalar_select %p146, %s145, 3
      %s148 = smul.addr %s147, 16
      %s149 = smul.addr %s148, 4
      %s150 = scalar_lea.vmem %s0, %s149
      %p151 = pneg %p35
      %p152 = pneg %p32
      %p153 = pneg %p56
      %p154 = pneg %p53
      %p155 = pneg %p77
      %p156 = pneg %p74
      %p157 = pneg %p103
      %p158 = pneg %p100
      %s159 = smul.u32 2, %s14
      %p160 = scmp.lt.s32.totalorder %s159, 3
      %s161 = scalar_select %p160, %s159, 3
      %s162 = smul.addr %s161, 4
      %s163 = smul.addr %s162, 8
      %s164 = scalar_lea.vmem %s3, %s163
      %s165 = smul.u32 2, %s14
      %p166 = scmp.lt.s32.totalorder %s165, 3
      %s167 = scalar_select %p166, %s165, 3
      %s168 = smul.addr %s167, 16
      %s169 = smul.addr %s168, 4
      %s170 = scalar_lea.vmem %s0, %s169
      %s171 = smul.u32 2, %s14
      %s172 = smul.u32 2, %s14
      %p173 = scmp.lt.s32.totalorder %s172, 3
      %s174 = scalar_select %p173, %s172, 3
      %s175 = smul.addr %s174, 4
      %s176 = smul.addr %s175, 8
      %s177 = scalar_lea.vmem %s3, %s176
      %s178 = smul.u32 2, %s14
      %v180 = vld [vmem:[%s170] sm:$0xff]
      %v181 = vld [vmem:[%s170 + $0x8] sm:$0xff]
      %v182 = vld [vmem:[%s170 + $0x10] sm:$0xff]
      %v183 = vld [vmem:[%s170 + $0x18] sm:$0xff]
      %v184 = vld [vmem:[%s170 + $0x20] sm:$0xff]
      %v185 = vld [vmem:[%s170 + $0x28] sm:$0xff]
      %v186 = vld [vmem:[%s170 + $0x30] sm:$0xff]
      %v187 = vld [vmem:[%s170 + $0x38] sm:$0xff]
      %v188 = vld [vmem:[%s170 + $0x40] sm:$0xff]
      %v189 = vld [vmem:[%s170 + $0x48] sm:$0xff]
      %v190 = vld [vmem:[%s170 + $0x50] sm:$0xff]
      %v191 = vld [vmem:[%s170 + $0x58] sm:$0xff]
      %v192 = vld [vmem:[%s170 + $0x60] sm:$0xff]
      %v193 = vld [vmem:[%s170 + $0x68] sm:$0xff]
      %v194 = vld [vmem:[%s170 + $0x70] sm:$0xff]
      %v195 = vld [vmem:[%s170 + $0x78] sm:$0xff]
      %v196 = vld [vmem:[%s1] sm:$0xf]
      %v197 = vld [vmem:[%s1 + $0x4] sm:$0xf]
      %v198 = vld [vmem:[%s1 + $0x8] sm:$0xf]
      %v199 = vld [vmem:[%s1 + $0xc] sm:$0xf]
      %v200 = vld [vmem:[%s1 + $0x10] sm:$0xf]
      %v201 = vld [vmem:[%s1 + $0x14] sm:$0xf]
      %v202 = vld [vmem:[%s1 + $0x18] sm:$0xf]
      %v203 = vld [vmem:[%s1 + $0x1c] sm:$0xf]
      %v204 = vld [vmem:[%s1 + $0x20] sm:$0xf]
      %v205 = vld [vmem:[%s1 + $0x24] sm:$0xf]
      %v206 = vld [vmem:[%s1 + $0x28] sm:$0xf]
      %v207 = vld [vmem:[%s1 + $0x2c] sm:$0xf]
      %v208 = vld [vmem:[%s1 + $0x30] sm:$0xf]
      %v209 = vld [vmem:[%s1 + $0x34] sm:$0xf]
      %v210 = vld [vmem:[%s1 + $0x38] sm:$0xf]
      %v211 = vld [vmem:[%s1 + $0x3c] sm:$0xf]
      %v212 = vld [vmem:[%s1 + $0x40] sm:$0xf]
      %v213 = vld [vmem:[%s1 + $0x44] sm:$0xf]
      %v214 = vld [vmem:[%s1 + $0x48] sm:$0xf]
      %v215 = vld [vmem:[%s1 + $0x4c] sm:$0xf]
      %v216 = vld [vmem:[%s2] sm:$0x1]
      %v218 = vlaneseq
      %v219 = vshrl.u32 %v218, 7
      %v220 = vsub.s32 0, %v219
      %v221 = vrot.slane %v216, %v220
      %v239 = vunpack.c.l.b16 %v180
      %v240 = vunpack.c.h.b16 %v180
      %v241 = vunpack.c.l.b16 %v181
      %v242 = vunpack.c.h.b16 %v181
      %v243 = vunpack.c.l.b16 %v182
      %v244 = vunpack.c.h.b16 %v182
      %v245 = vunpack.c.l.b16 %v183
      %v246 = vunpack.c.h.b16 %v183
      %v247 = vunpack.c.l.b16 %v184
      %v248 = vunpack.c.h.b16 %v184
      %v249 = vunpack.c.l.b16 %v185
      %v250 = vunpack.c.h.b16 %v185
      %v251 = vunpack.c.l.b16 %v186
      %v252 = vunpack.c.h.b16 %v186
      %v253 = vunpack.c.l.b16 %v187
      %v254 = vunpack.c.h.b16 %v187
      %v255 = vunpack.c.l.b16 %v188
      %v256 = vunpack.c.h.b16 %v188
      %v257 = vunpack.c.l.b16 %v189
      %v258 = vunpack.c.h.b16 %v189
      %v259 = vunpack.c.l.b16 %v190
      %v260 = vunpack.c.h.b16 %v190
      %v261 = vunpack.c.l.b16 %v191
      %v262 = vunpack.c.h.b16 %v191
      %v263 = vunpack.c.l.b16 %v192
      %v264 = vunpack.c.h.b16 %v192
      %v265 = vunpack.c.l.b16 %v193
      %v266 = vunpack.c.h.b16 %v193
      %v267 = vunpack.c.l.b16 %v194
      %v268 = vunpack.c.h.b16 %v194
      %v269 = vunpack.c.l.b16 %v195
      %v270 = vunpack.c.h.b16 %v195
      %v271 = vpack.c.b16 %v241, %v239
      %v272 = vpack.c.b16 %v242, %v240
      %v273 = vpack.c.b16 %v245, %v243
      %v274 = vpack.c.b16 %v246, %v244
      %v275 = vpack.c.b16 %v249, %v247
      %v276 = vpack.c.b16 %v250, %v248
      %v277 = vpack.c.b16 %v253, %v251
      %v278 = vpack.c.b16 %v254, %v252
      %v279 = vpack.c.b16 %v257, %v255
      %v280 = vpack.c.b16 %v258, %v256
      %v281 = vpack.c.b16 %v261, %v259
      %v282 = vpack.c.b16 %v262, %v260
      %v283 = vpack.c.b16 %v265, %v263
      %v284 = vpack.c.b16 %v266, %v264
      %v285 = vpack.c.b16 %v269, %v267
      %v286 = vpack.c.b16 %v270, %v268
      %v315 = vunpack.c.l.b16 %v196
      %v316 = vunpack.c.l.b16 %v197
      %v317 = vunpack.c.l.b16 %v198
      %v318 = vunpack.c.l.b16 %v199
      %v319 = vunpack.c.l.b16 %v200
      %v320 = vunpack.c.l.b16 %v201
      %v321 = vunpack.c.l.b16 %v202
      %v322 = vunpack.c.l.b16 %v203
      %v323 = vunpack.c.l.b16 %v204
      %v324 = vunpack.c.l.b16 %v205
      %v325 = vunpack.c.l.b16 %v206
      %v326 = vunpack.c.l.b16 %v207
      %v327 = vunpack.c.l.b16 %v208
      %v328 = vunpack.c.l.b16 %v209
      %v329 = vunpack.c.l.b16 %v210
      %v330 = vunpack.c.l.b16 %v211
      %v331 = vunpack.c.l.b16 %v212
      %v332 = vunpack.c.l.b16 %v213
      %v333 = vunpack.c.l.b16 %v214
      %v334 = vunpack.c.l.b16 %v215
      %v335 = vpack.c.b16 %v316, %v315
      %v336 = vpack.c.b16 %v318, %v317
      %v337 = vpack.c.b16 %v320, %v319
      %v338 = vpack.c.b16 %v322, %v321
      %v339 = vpack.c.b16 %v324, %v323
      %v340 = vpack.c.b16 %v326, %v325
      %v341 = vpack.c.b16 %v328, %v327
      %v342 = vpack.c.b16 %v330, %v329
      %v343 = vpack.c.b16 %v332, %v331
      %v344 = vpack.c.b16 %v334, %v333
      %vm355 = vcmask 261120
      %v357 = vsel %vm355, %v272, 0
      %v360 = vsel %vm355, %v274, 0
      %v363 = vsel %vm355, %v276, 0
      %v366 = vsel %vm355, %v278, 0
      %v369 = vsel %vm355, %v280, 0
      %v372 = vsel %vm355, %v282, 0
      %v375 = vsel %vm355, %v284, 0
      %v378 = vsel %vm355, %v286, 0
      %380 = vmatprep.subr.bf16.mxu0 0
      %381 = vmatpush1.bf16.msra.mxu0 %v342
      %382 = vmatprep.subr.bf16.mxu0 0
      %383 = vmatpush1.bf16.msra.mxu0 %v341
      %384 = vmatprep.subr.bf16.mxu0 0
      %385 = vmatpush1.bf16.msra.mxu0 %v340
      %386 = vmatprep.subr.bf16.mxu0 0
      %387 = vmatpush1.bf16.msra.mxu0 %v339
      %388 = vmatprep.subr.bf16.mxu0 0
      %389 = vmatpush1.bf16.msra.mxu0 %v338
      %390 = vmatprep.subr.bf16.mxu0 0
      %391 = vmatpush1.bf16.msra.mxu0 %v337
      %392 = vmatprep.subr.bf16.mxu0 0
      %393 = vmatpush1.bf16.msra.mxu0 %v336
      %394 = vmatprep.subr.bf16.mxu0 0
      %395 = vmatpush1.bf16.msra.mxu0 %v335
      %396 = vmatprep.subr.bf16.mxu0 0
      %397 = vmatpush2.bf16.msra.mxu0 0
      %398 = vmatprep.subr.bf16.mxu0 0
      %399 = vmatpush2.bf16.msra.mxu0 0
      %400 = vmatprep.subr.bf16.mxu0 0
      %401 = vmatpush2.bf16.msra.mxu0 0
      %402 = vmatprep.subr.bf16.mxu0 0
      %403 = vmatpush2.bf16.msra.mxu0 0
      %404 = vmatprep.subr.bf16.mxu0 0
      %405 = vmatpush2.bf16.msra.mxu0 0
      %406 = vmatprep.subr.bf16.mxu0 0
      %407 = vmatpush2.bf16.msra.mxu0 0
      %408 = vmatprep.subr.bf16.mxu0 0
      %409 = vmatpush2.bf16.msra.mxu0 %v344
      %410 = vmatprep.subr.bf16.mxu0 0
      %411 = vmatpush2.bf16.msra.mxu0 %v343
      %412 = vmatprep.mubr.bf16.mxu0 %v357
      %413 = vmatmul.mubr.bf16.gmra.mxu0 %v271
      %v414 = vpop.f32.mrf.mxu0
      %v415 = vadd.f32 %v221, %v414
      %v416 = vpop.f32.mrf.mxu0
      %v417 = vpop.f32.mrf.mxu0
      %v418 = vadd.f32 %v221, %v417
      %v419 = vpop.f32.mrf.mxu0
      %420 = vmatprep.mubr.bf16.mxu0 %v360
      %421 = vmatmul.mubr.bf16.gmra.mxu0 %v273
      %v422 = vpop.f32.mrf.mxu0
      %v423 = vadd.f32 %v221, %v422
      %v424 = vpop.f32.mrf.mxu0
      %v425 = vpop.f32.mrf.mxu0
      %v426 = vadd.f32 %v221, %v425
      %v427 = vpop.f32.mrf.mxu0
      %428 = vmatprep.mubr.bf16.mxu0 %v363
      %429 = vmatmul.mubr.bf16.gmra.mxu0 %v275
      %v430 = vpop.f32.mrf.mxu0
      %v431 = vadd.f32 %v221, %v430
      %v432 = vpop.f32.mrf.mxu0
      %v433 = vpop.f32.mrf.mxu0
      %v434 = vadd.f32 %v221, %v433
      %v435 = vpop.f32.mrf.mxu0
      %436 = vmatprep.mubr.bf16.mxu0 %v366
      %437 = vmatmul.mubr.bf16.gmra.mxu0 %v277
      %v438 = vpop.f32.mrf.mxu0
      %v439 = vadd.f32 %v221, %v438
      %v440 = vpop.f32.mrf.mxu0
      %v441 = vpop.f32.mrf.mxu0
      %v442 = vadd.f32 %v221, %v441
      %v443 = vpop.f32.mrf.mxu0
      %444 = vmatprep.mubr.bf16.mxu0 %v369
      %445 = vmatmul.mubr.bf16.gmra.mxu0 %v279
      %v446 = vpop.f32.mrf.mxu0
      %v447 = vadd.f32 %v221, %v446
      %v448 = vpop.f32.mrf.mxu0
      %v449 = vpop.f32.mrf.mxu0
      %v450 = vadd.f32 %v221, %v449
      %v451 = vpop.f32.mrf.mxu0
      %452 = vmatprep.mubr.bf16.mxu0 %v372
      %453 = vmatmul.mubr.bf16.gmra.mxu0 %v281
      %v454 = vpop.f32.mrf.mxu0
      %v455 = vadd.f32 %v221, %v454
      %v456 = vpop.f32.mrf.mxu0
      %v457 = vpop.f32.mrf.mxu0
      %v458 = vadd.f32 %v221, %v457
      %v459 = vpop.f32.mrf.mxu0
      %460 = vmatprep.mubr.bf16.mxu0 %v375
      %461 = vmatmul.mubr.bf16.gmra.mxu0 %v283
      %v462 = vpop.f32.mrf.mxu0
      %v463 = vadd.f32 %v221, %v462
      %v464 = vpop.f32.mrf.mxu0
      %v465 = vpop.f32.mrf.mxu0
      %v466 = vadd.f32 %v221, %v465
      %v467 = vpop.f32.mrf.mxu0
      %468 = vmatprep.mubr.bf16.mxu0 %v378
      %469 = vmatmul.mubr.bf16.gmra.mxu0 %v285
      %v470 = vpop.f32.mrf.mxu0
      %v471 = vadd.f32 %v221, %v470
      %v472 = vpop.f32.mrf.mxu0
      %v473 = vpop.f32.mrf.mxu0
      %v474 = vadd.f32 %v221, %v473
      %v475 = vpop.f32.mrf.mxu0
      %476 = vdwg.mxu0
      %v477 = vmax.f32 %v415, 0.0
      %v478 = vmax.f32 %v418, 0.0
      %v479 = vmax.f32 %v423, 0.0
      %v480 = vmax.f32 %v426, 0.0
      %v481 = vmax.f32 %v431, 0.0
      %v482 = vmax.f32 %v434, 0.0
      %v483 = vmax.f32 %v439, 0.0
      %v484 = vmax.f32 %v442, 0.0
      %v485 = vmax.f32 %v447, 0.0
      %v486 = vmax.f32 %v450, 0.0
      %v487 = vmax.f32 %v455, 0.0
      %v488 = vmax.f32 %v458, 0.0
      %v489 = vmax.f32 %v463, 0.0
      %v490 = vmax.f32 %v466, 0.0
      %v491 = vmax.f32 %v471, 0.0
      %v492 = vmax.f32 %v474, 0.0
      %vm493 = vcmask 517120
      %494 = vst.msk [vmem:[#allocation2] sm:$0x3] %vm493, 0.0
      %495 = vst.msk [vmem:[#allocation2 + $0x10] sm:$0x3] %vm493, 0.0
      %496 = vst.msk [vmem:[#allocation2 + $0x20] sm:$0x3] %vm493, 0.0
      %497 = vst.msk [vmem:[#allocation2 + $0x30] sm:$0x3] %vm493, 0.0
      %498 = vst.msk [vmem:[#allocation2 + $0x40] sm:$0x3] %vm493, 0.0
      %499 = vst.msk [vmem:[#allocation2 + $0x50] sm:$0x3] %vm493, 0.0
      %500 = vst.msk [vmem:[#allocation2 + $0x60] sm:$0x3] %vm493, 0.0
      %501 = vst.msk [vmem:[#allocation2 + $0x70] sm:$0x3] %vm493, 0.0
      %502 = vst.msk [vmem:[#allocation2 + $0x80] sm:$0x3] %vm493, 0.0
      %503 = vst.msk [vmem:[#allocation2 + $0x90] sm:$0x3] %vm493, 0.0
      %504 = vst.msk [vmem:[#allocation2 + $0xa0] sm:$0x3] %vm493, 0.0
      %505 = vst.msk [vmem:[#allocation2 + $0xb0] sm:$0x3] %vm493, 0.0
      %506 = vst.msk [vmem:[#allocation2 + $0xc0] sm:$0x3] %vm493, 0.0
      %507 = vst.msk [vmem:[#allocation2 + $0xd0] sm:$0x3] %vm493, 0.0
      %508 = vst.msk [vmem:[#allocation2 + $0xe0] sm:$0x3] %vm493, 0.0
      %509 = vst.msk [vmem:[#allocation2 + $0xf0] sm:$0x3] %vm493, 0.0
      %510 = vst.msk [vmem:[#allocation2 + $0xa] sm:$0x3] %vm493, 0.0
      %511 = vst.msk [vmem:[#allocation2 + $0x1a] sm:$0x3] %vm493, 0.0
      %512 = vst.msk [vmem:[#allocation2 + $0x2a] sm:$0x3] %vm493, 0.0
      %513 = vst.msk [vmem:[#allocation2 + $0x3a] sm:$0x3] %vm493, 0.0
      %514 = vst.msk [vmem:[#allocation2 + $0x4a] sm:$0x3] %vm493, 0.0
      %515 = vst.msk [vmem:[#allocation2 + $0x5a] sm:$0x3] %vm493, 0.0
      %516 = vst.msk [vmem:[#allocation2 + $0x6a] sm:$0x3] %vm493, 0.0
      %517 = vst.msk [vmem:[#allocation2 + $0x7a] sm:$0x3] %vm493, 0.0
      %518 = vst.msk [vmem:[#allocation2 + $0x8a] sm:$0x3] %vm493, 0.0
      %519 = vst.msk [vmem:[#allocation2 + $0x9a] sm:$0x3] %vm493, 0.0
      %520 = vst.msk [vmem:[#allocation2 + $0xaa] sm:$0x3] %vm493, 0.0
      %521 = vst.msk [vmem:[#allocation2 + $0xba] sm:$0x3] %vm493, 0.0
      %522 = vst.msk [vmem:[#allocation2 + $0xca] sm:$0x3] %vm493, 0.0
      %523 = vst.msk [vmem:[#allocation2 + $0xda] sm:$0x3] %vm493, 0.0
      %524 = vst.msk [vmem:[#allocation2 + $0xea] sm:$0x3] %vm493, 0.0
      %525 = vst.msk [vmem:[#allocation2 + $0xfa] sm:$0x3] %vm493, 0.0
      %vm526 = vcmask 523264
      %527 = vst.msk [vmem:[#allocation2 + $0x2] sm:$0xff] %vm526, %v477
      %528 = vst.msk [vmem:[#allocation2 + $0x12] sm:$0xff] %vm526, %v478
      %529 = vst.msk [vmem:[#allocation2 + $0x22] sm:$0xff] %vm526, %v479
      %530 = vst.msk [vmem:[#allocation2 + $0x32] sm:$0xff] %vm526, %v480
      %531 = vst.msk [vmem:[#allocation2 + $0x42] sm:$0xff] %vm526, %v481
      %532 = vst.msk [vmem:[#allocation2 + $0x52] sm:$0xff] %vm526, %v482
      %533 = vst.msk [vmem:[#allocation2 + $0x62] sm:$0xff] %vm526, %v483
      %534 = vst.msk [vmem:[#allocation2 + $0x72] sm:$0xff] %vm526, %v484
      %535 = vst.msk [vmem:[#allocation2 + $0x82] sm:$0xff] %vm526, %v485
      %536 = vst.msk [vmem:[#allocation2 + $0x92] sm:$0xff] %vm526, %v486
      %537 = vst.msk [vmem:[#allocation2 + $0xa2] sm:$0xff] %vm526, %v487
      %538 = vst.msk [vmem:[#allocation2 + $0xb2] sm:$0xff] %vm526, %v488
      %539 = vst.msk [vmem:[#allocation2 + $0xc2] sm:$0xff] %vm526, %v489
      %540 = vst.msk [vmem:[#allocation2 + $0xd2] sm:$0xff] %vm526, %v490
      %541 = vst.msk [vmem:[#allocation2 + $0xe2] sm:$0xff] %vm526, %v491
      %542 = vst.msk [vmem:[#allocation2 + $0xf2] sm:$0xff] %vm526, %v492
      %v543 = vld [vmem:[#allocation2] sm:$0xff]
      %v544 = vld [vmem:[#allocation2 + $0x10] sm:$0xff]
      %v545 = vld [vmem:[#allocation2 + $0x20] sm:$0xff]
      %v546 = vld [vmem:[#allocation2 + $0x30] sm:$0xff]
      %v547 = vld [vmem:[#allocation2 + $0x40] sm:$0xff]
      %v548 = vld [vmem:[#allocation2 + $0x50] sm:$0xff]
      %v549 = vld [vmem:[#allocation2 + $0x60] sm:$0xff]
      %v550 = vld [vmem:[#allocation2 + $0x70] sm:$0xff]
      %v551 = vld [vmem:[#allocation2 + $0x80] sm:$0xff]
      %v552 = vld [vmem:[#allocation2 + $0x90] sm:$0xff]
      %v553 = vld [vmem:[#allocation2 + $0xa0] sm:$0xff]
      %v554 = vld [vmem:[#allocation2 + $0xb0] sm:$0xff]
      %v555 = vld [vmem:[#allocation2 + $0xc0] sm:$0xff]
      %v556 = vld [vmem:[#allocation2 + $0xd0] sm:$0xff]
      %v557 = vld [vmem:[#allocation2 + $0xe0] sm:$0xff]
      %v558 = vld [vmem:[#allocation2 + $0xf0] sm:$0xff]
      %v559 = vld [vmem:[#allocation2 + $0x1] sm:$0xff]
      %v560 = vld [vmem:[#allocation2 + $0x11] sm:$0xff]
      %v561 = vld [vmem:[#allocation2 + $0x21] sm:$0xff]
      %v562 = vld [vmem:[#allocation2 + $0x31] sm:$0xff]
      %v563 = vld [vmem:[#allocation2 + $0x41] sm:$0xff]
      %v564 = vld [vmem:[#allocation2 + $0x51] sm:$0xff]
      %v565 = vld [vmem:[#allocation2 + $0x61] sm:$0xff]
      %v566 = vld [vmem:[#allocation2 + $0x71] sm:$0xff]
      %v567 = vld [vmem:[#allocation2 + $0x81] sm:$0xff]
      %v568 = vld [vmem:[#allocation2 + $0x91] sm:$0xff]
      %v569 = vld [vmem:[#allocation2 + $0xa1] sm:$0xff]
      %v570 = vld [vmem:[#allocation2 + $0xb1] sm:$0xff]
      %v571 = vld [vmem:[#allocation2 + $0xc1] sm:$0xff]
      %v572 = vld [vmem:[#allocation2 + $0xd1] sm:$0xff]
      %v573 = vld [vmem:[#allocation2 + $0xe1] sm:$0xff]
      %v574 = vld [vmem:[#allocation2 + $0xf1] sm:$0xff]
      %v575 = vmax.f32 %v543, %v559
      %v576 = vmax.f32 %v544, %v560
      %v577 = vmax.f32 %v545, %v561
      %v578 = vmax.f32 %v546, %v562
      %v579 = vmax.f32 %v547, %v563
      %v580 = vmax.f32 %v548, %v564
      %v581 = vmax.f32 %v549, %v565
      %v582 = vmax.f32 %v550, %v566
      %v583 = vmax.f32 %v551, %v567
      %v584 = vmax.f32 %v552, %v568
      %v585 = vmax.f32 %v553, %v569
      %v586 = vmax.f32 %v554, %v570
      %v587 = vmax.f32 %v555, %v571
      %v588 = vmax.f32 %v556, %v572
      %v589 = vmax.f32 %v557, %v573
      %v590 = vmax.f32 %v558, %v574
      %v591 = vld [vmem:[#allocation2 + $0x2] sm:$0xff]
      %v592 = vld [vmem:[#allocation2 + $0x12] sm:$0xff]
      %v593 = vld [vmem:[#allocation2 + $0x22] sm:$0xff]
      %v594 = vld [vmem:[#allocation2 + $0x32] sm:$0xff]
      %v595 = vld [vmem:[#allocation2 + $0x42] sm:$0xff]
      %v596 = vld [vmem:[#allocation2 + $0x52] sm:$0xff]
      %v597 = vld [vmem:[#allocation2 + $0x62] sm:$0xff]
      %v598 = vld [vmem:[#allocation2 + $0x72] sm:$0xff]
      %v599 = vld [vmem:[#allocation2 + $0x82] sm:$0xff]
      %v600 = vld [vmem:[#allocation2 + $0x92] sm:$0xff]
      %v601 = vld [vmem:[#allocation2 + $0xa2] sm:$0xff]
      %v602 = vld [vmem:[#allocation2 + $0xb2] sm:$0xff]
      %v603 = vld [vmem:[#allocation2 + $0xc2] sm:$0xff]
      %v604 = vld [vmem:[#allocation2 + $0xd2] sm:$0xff]
      %v605 = vld [vmem:[#allocation2 + $0xe2] sm:$0xff]
      %v606 = vld [vmem:[#allocation2 + $0xf2] sm:$0xff]
      %v607 = vmax.f32 %v575, %v591
      %v608 = vmax.f32 %v576, %v592
      %v609 = vmax.f32 %v577, %v593
      %v610 = vmax.f32 %v578, %v594
      %v611 = vmax.f32 %v579, %v595
      %v612 = vmax.f32 %v580, %v596
      %v613 = vmax.f32 %v581, %v597
      %v614 = vmax.f32 %v582, %v598
      %v615 = vmax.f32 %v583, %v599
      %v616 = vmax.f32 %v584, %v600
      %v617 = vmax.f32 %v585, %v601
      %v618 = vmax.f32 %v586, %v602
      %v619 = vmax.f32 %v587, %v603
      %v620 = vmax.f32 %v588, %v604
      %v621 = vmax.f32 %v589, %v605
      %v622 = vmax.f32 %v590, %v606
      %v623 = vld [vmem:[#allocation2 + $0x3] sm:$0xff]
      %v624 = vld [vmem:[#allocation2 + $0x13] sm:$0xff]
      %v625 = vld [vmem:[#allocation2 + $0x23] sm:$0xff]
      %v626 = vld [vmem:[#allocation2 + $0x33] sm:$0xff]
      %v627 = vld [vmem:[#allocation2 + $0x43] sm:$0xff]
      %v628 = vld [vmem:[#allocation2 + $0x53] sm:$0xff]
      %v629 = vld [vmem:[#allocation2 + $0x63] sm:$0xff]
      %v630 = vld [vmem:[#allocation2 + $0x73] sm:$0xff]
      %v631 = vld [vmem:[#allocation2 + $0x83] sm:$0xff]
      %v632 = vld [vmem:[#allocation2 + $0x93] sm:$0xff]
      %v633 = vld [vmem:[#allocation2 + $0xa3] sm:$0xff]
      %v634 = vld [vmem:[#allocation2 + $0xb3] sm:$0xff]
      %v635 = vld [vmem:[#allocation2 + $0xc3] sm:$0xff]
      %v636 = vld [vmem:[#allocation2 + $0xd3] sm:$0xff]
      %v637 = vld [vmem:[#allocation2 + $0xe3] sm:$0xff]
      %v638 = vld [vmem:[#allocation2 + $0xf3] sm:$0xff]
      %v639 = vmax.f32 %v607, %v623
      %v640 = vmax.f32 %v608, %v624
      %v641 = vmax.f32 %v609, %v625
      %v642 = vmax.f32 %v610, %v626
      %v643 = vmax.f32 %v611, %v627
      %v644 = vmax.f32 %v612, %v628
      %v645 = vmax.f32 %v613, %v629
      %v646 = vmax.f32 %v614, %v630
      %v647 = vmax.f32 %v615, %v631
      %v648 = vmax.f32 %v616, %v632
      %v649 = vmax.f32 %v617, %v633
      %v650 = vmax.f32 %v618, %v634
      %v651 = vmax.f32 %v619, %v635
      %v652 = vmax.f32 %v620, %v636
      %v653 = vmax.f32 %v621, %v637
      %v654 = vmax.f32 %v622, %v638
      %v655 = vld [vmem:[#allocation2 + $0x4] sm:$0xff]
      %v656 = vld [vmem:[#allocation2 + $0x14] sm:$0xff]
      %v657 = vld [vmem:[#allocation2 + $0x24] sm:$0xff]
      %v658 = vld [vmem:[#allocation2 + $0x34] sm:$0xff]
      %v659 = vld [vmem:[#allocation2 + $0x44] sm:$0xff]
      %v660 = vld [vmem:[#allocation2 + $0x54] sm:$0xff]
      %v661 = vld [vmem:[#allocation2 + $0x64] sm:$0xff]
      %v662 = vld [vmem:[#allocation2 + $0x74] sm:$0xff]
      %v663 = vld [vmem:[#allocation2 + $0x84] sm:$0xff]
      %v664 = vld [vmem:[#allocation2 + $0x94] sm:$0xff]
      %v665 = vld [vmem:[#allocation2 + $0xa4] sm:$0xff]
      %v666 = vld [vmem:[#allocation2 + $0xb4] sm:$0xff]
      %v667 = vld [vmem:[#allocation2 + $0xc4] sm:$0xff]
      %v668 = vld [vmem:[#allocation2 + $0xd4] sm:$0xff]
      %v669 = vld [vmem:[#allocation2 + $0xe4] sm:$0xff]
      %v670 = vld [vmem:[#allocation2 + $0xf4] sm:$0xff]
      %v671 = vmax.f32 %v639, %v655
      %v672 = vmax.f32 %v640, %v656
      %v673 = vmax.f32 %v641, %v657
      %v674 = vmax.f32 %v642, %v658
      %v675 = vmax.f32 %v643, %v659
      %v676 = vmax.f32 %v644, %v660
      %v677 = vmax.f32 %v645, %v661
      %v678 = vmax.f32 %v646, %v662
      %v679 = vmax.f32 %v647, %v663
      %v680 = vmax.f32 %v648, %v664
      %v681 = vmax.f32 %v649, %v665
      %v682 = vmax.f32 %v650, %v666
      %v683 = vmax.f32 %v651, %v667
      %v684 = vmax.f32 %v652, %v668
      %v685 = vmax.f32 %v653, %v669
      %v686 = vmax.f32 %v654, %v670
      %v687 = vmax.f32 %v671, 0.0
      %v688 = vmax.f32 %v671, %v672
      %v689 = vmax.f32 %v672, %v673
      %v690 = vmax.f32 %v673, %v674
      %v691 = vmax.f32 %v674, %v675
      %v692 = vmax.f32 %v675, %v676
      %v693 = vmax.f32 %v676, %v677
      %v694 = vmax.f32 %v679, 0.0
      %v695 = vmax.f32 %v679, %v680
      %v696 = vmax.f32 %v680, %v681
      %v697 = vmax.f32 %v681, %v682
      %v698 = vmax.f32 %v682, %v683
      %v699 = vmax.f32 %v683, %v684
      %v700 = vmax.f32 %v684, %v685
      %v701 = vmax.f32 %v687, %v672
      %v702 = vmax.f32 %v688, %v673
      %v703 = vmax.f32 %v689, %v674
      %v704 = vmax.f32 %v690, %v675
      %v705 = vmax.f32 %v691, %v676
      %v706 = vmax.f32 %v692, %v677
      %v707 = vmax.f32 %v693, %v678
      %v708 = vmax.f32 %v694, %v680
      %v709 = vmax.f32 %v695, %v681
      %v710 = vmax.f32 %v696, %v682
      %v711 = vmax.f32 %v697, %v683
      %v712 = vmax.f32 %v698, %v684
      %v713 = vmax.f32 %v699, %v685
      %v714 = vmax.f32 %v700, %v686
      %v715 = vmax.f32 %v701, %v673
      %v716 = vmax.f32 %v702, %v674
      %v717 = vmax.f32 %v703, %v675
      %v718 = vmax.f32 %v704, %v676
      %v719 = vmax.f32 %v705, %v677
      %v720 = vmax.f32 %v706, %v678
      %v721 = vmax.f32 %v707, 0.0
      %v722 = vmax.f32 %v708, %v681
      %v723 = vmax.f32 %v709, %v682
      %v724 = vmax.f32 %v710, %v683
      %v725 = vmax.f32 %v711, %v684
      %v726 = vmax.f32 %v712, %v685
      %v727 = vmax.f32 %v713, %v686
      %v728 = vmax.f32 %v714, 0.0
      %v729 = vmax.f32 %v715, %v674
      %v730 = vmax.f32 %v716, %v675
      %v731 = vmax.f32 %v717, %v676
      %v732 = vmax.f32 %v718, %v677
      %v733 = vmax.f32 %v719, %v678
      %v734 = vmax.f32 %v720, 0.0
      %v735 = vmax.f32 %v721, 0.0
      %v736 = vmax.f32 %v722, %v682
      %v737 = vmax.f32 %v723, %v683
      %v738 = vmax.f32 %v724, %v684
      %v739 = vmax.f32 %v725, %v685
      %v740 = vmax.f32 %v726, %v686
      %v741 = vmax.f32 %v727, 0.0
      %v742 = vmax.f32 %v728, 0.0
      %v743 = vcombine.low %v715, %v730
      %v744 = vcombine.high %v715, %v730
      %v746 = vunpack.c.l.s4 1983009808
      %v747 = vunpack.c.0.s8 %v746
      %v748 = vlaneseq
      %v749 = vshrl.u32 %v748, 7
      %v750 = vsub.s32 %v747, %v749
      %v751 = vrot.slane %v743, %v750
      %v753 = vunpack.c.l.s4 1983009808
      %v754 = vunpack.c.0.s8 %v753
      %v755 = vlaneseq
      %v756 = vshrl.u32 %v755, 7
      %v757 = vsub.s32 %v754, %v756
      %v758 = vrot.slane %v744, %v757
      %v759 = vcombine.low %v729, %v731
      %v760 = vcombine.high %v729, %v731
      %v762 = vunpack.c.l.s4 1983009808
      %v763 = vunpack.c.0.s8 %v762
      %v764 = vlaneseq
      %v765 = vshrl.u32 %v764, 7
      %v766 = vsub.s32 %v763, %v765
      %v767 = vrot.slane %v759, %v766
      %v769 = vunpack.c.l.s4 1983009808
      %v770 = vunpack.c.0.s8 %v769
      %v771 = vlaneseq
      %v772 = vshrl.u32 %v771, 7
      %v773 = vsub.s32 %v770, %v772
      %v774 = vrot.slane %v760, %v773
      %v775 = vcombine.low %v732, %v734
      %v776 = vcombine.high %v732, %v734
      %v778 = vunpack.c.l.s4 1983009808
      %v779 = vunpack.c.0.s8 %v778
      %v780 = vlaneseq
      %v781 = vshrl.u32 %v780, 7
      %v782 = vsub.s32 %v779, %v781
      %v783 = vrot.slane %v775, %v782
      %v785 = vunpack.c.l.s4 1983009808
      %v786 = vunpack.c.0.s8 %v785
      %v787 = vlaneseq
      %v788 = vshrl.u32 %v787, 7
      %v789 = vsub.s32 %v786, %v788
      %v790 = vrot.slane %v776, %v789
      %v791 = vcombine.low %v733, %v735
      %v792 = vcombine.high %v733, %v735
      %v794 = vunpack.c.l.s4 1983009808
      %v795 = vunpack.c.0.s8 %v794
      %v796 = vlaneseq
      %v797 = vshrl.u32 %v796, 7
      %v798 = vsub.s32 %v795, %v797
      %v799 = vrot.slane %v791, %v798
      %v801 = vunpack.c.l.s4 1983009808
      %v802 = vunpack.c.0.s8 %v801
      %v803 = vlaneseq
      %v804 = vshrl.u32 %v803, 7
      %v805 = vsub.s32 %v802, %v804
      %v806 = vrot.slane %v792, %v805
      %v807 = vcombine.low %v751, %v767
      %v808 = vcombine.high %v751, %v767
      %v810 = vunpack.c.l.s4 1934713408
      %v811 = vunpack.c.0.s8 %v810
      %v812 = vlaneseq
      %v813 = vshrl.u32 %v812, 7
      %v814 = vsub.s32 %v811, %v813
      %v815 = vrot.slane %v807, %v814
      %v817 = vunpack.c.l.s4 1934713408
      %v818 = vunpack.c.0.s8 %v817
      %v819 = vlaneseq
      %v820 = vshrl.u32 %v819, 7
      %v821 = vsub.s32 %v818, %v820
      %v822 = vrot.slane %v808, %v821
      %v823 = vcombine.low %v758, %v774
      %v824 = vcombine.high %v758, %v774
      %v826 = vunpack.c.l.s4 1934713408
      %v827 = vunpack.c.0.s8 %v826
      %v828 = vlaneseq
      %v829 = vshrl.u32 %v828, 7
      %v830 = vsub.s32 %v827, %v829
      %v831 = vrot.slane %v823, %v830
      %v833 = vunpack.c.l.s4 1934713408
      %v834 = vunpack.c.0.s8 %v833
      %v835 = vlaneseq
      %v836 = vshrl.u32 %v835, 7
      %v837 = vsub.s32 %v834, %v836
      %v838 = vrot.slane %v824, %v837
      %v839 = vcombine.low %v783, %v799
      %v840 = vcombine.high %v783, %v799
      %v842 = vunpack.c.l.s4 1934713408
      %v843 = vunpack.c.0.s8 %v842
      %v844 = vlaneseq
      %v845 = vshrl.u32 %v844, 7
      %v846 = vsub.s32 %v843, %v845
      %v847 = vrot.slane %v839, %v846
      %v849 = vunpack.c.l.s4 1934713408
      %v850 = vunpack.c.0.s8 %v849
      %v851 = vlaneseq
      %v852 = vshrl.u32 %v851, 7
      %v853 = vsub.s32 %v850, %v852
      %v854 = vrot.slane %v840, %v853
      %v855 = vcombine.low %v790, %v806
      %v856 = vcombine.high %v790, %v806
      %v858 = vunpack.c.l.s4 1934713408
      %v859 = vunpack.c.0.s8 %v858
      %v860 = vlaneseq
      %v861 = vshrl.u32 %v860, 7
      %v862 = vsub.s32 %v859, %v861
      %v863 = vrot.slane %v855, %v862
      %v865 = vunpack.c.l.s4 1934713408
      %v866 = vunpack.c.0.s8 %v865
      %v867 = vlaneseq
      %v868 = vshrl.u32 %v867, 7
      %v869 = vsub.s32 %v866, %v868
      %v870 = vrot.slane %v856, %v869
      %v871 = vcombine.low %v815, %v847
      %v872 = vcombine.high %v815, %v847
      %v873 = vcombine.low %v822, %v854
      %v874 = vcombine.high %v822, %v854
      %v875 = vcombine.low %v831, %v863
      %v876 = vcombine.high %v831, %v863
      %v877 = vcombine.low %v838, %v870
      %v878 = vcombine.high %v838, %v870
      %v879 = vcombine.low %v722, %v737
      %v880 = vcombine.high %v722, %v737
      %v882 = vunpack.c.l.s4 1983009808
      %v883 = vunpack.c.0.s8 %v882
      %v884 = vlaneseq
      %v885 = vshrl.u32 %v884, 7
      %v886 = vsub.s32 %v883, %v885
      %v887 = vrot.slane %v879, %v886
      %v889 = vunpack.c.l.s4 1983009808
      %v890 = vunpack.c.0.s8 %v889
      %v891 = vlaneseq
      %v892 = vshrl.u32 %v891, 7
      %v893 = vsub.s32 %v890, %v892
      %v894 = vrot.slane %v880, %v893
      %v895 = vcombine.low %v736, %v738
      %v896 = vcombine.high %v736, %v738
      %v898 = vunpack.c.l.s4 1983009808
      %v899 = vunpack.c.0.s8 %v898
      %v900 = vlaneseq
      %v901 = vshrl.u32 %v900, 7
      %v902 = vsub.s32 %v899, %v901
      %v903 = vrot.slane %v895, %v902
      %v905 = vunpack.c.l.s4 1983009808
      %v906 = vunpack.c.0.s8 %v905
      %v907 = vlaneseq
      %v908 = vshrl.u32 %v907, 7
      %v909 = vsub.s32 %v906, %v908
      %v910 = vrot.slane %v896, %v909
      %v911 = vcombine.low %v739, %v741
      %v912 = vcombine.high %v739, %v741
      %v914 = vunpack.c.l.s4 1983009808
      %v915 = vunpack.c.0.s8 %v914
      %v916 = vlaneseq
      %v917 = vshrl.u32 %v916, 7
      %v918 = vsub.s32 %v915, %v917
      %v919 = vrot.slane %v911, %v918
      %v921 = vunpack.c.l.s4 1983009808
      %v922 = vunpack.c.0.s8 %v921
      %v923 = vlaneseq
      %v924 = vshrl.u32 %v923, 7
      %v925 = vsub.s32 %v922, %v924
      %v926 = vrot.slane %v912, %v925
      %v927 = vcombine.low %v740, %v742
      %v928 = vcombine.high %v740, %v742
      %v930 = vunpack.c.l.s4 1983009808
      %v931 = vunpack.c.0.s8 %v930
      %v932 = vlaneseq
      %v933 = vshrl.u32 %v932, 7
      %v934 = vsub.s32 %v931, %v933
      %v935 = vrot.slane %v927, %v934
      %v937 = vunpack.c.l.s4 1983009808
      %v938 = vunpack.c.0.s8 %v937
      %v939 = vlaneseq
      %v940 = vshrl.u32 %v939, 7
      %v941 = vsub.s32 %v938, %v940
      %v942 = vrot.slane %v928, %v941
      %v943 = vcombine.low %v887, %v903
      %v944 = vcombine.high %v887, %v903
      %v946 = vunpack.c.l.s4 1934713408
      %v947 = vunpack.c.0.s8 %v946
      %v948 = vlaneseq
      %v949 = vshrl.u32 %v948, 7
      %v950 = vsub.s32 %v947, %v949
      %v951 = vrot.slane %v943, %v950
      %v953 = vunpack.c.l.s4 1934713408
      %v954 = vunpack.c.0.s8 %v953
      %v955 = vlaneseq
      %v956 = vshrl.u32 %v955, 7
      %v957 = vsub.s32 %v954, %v956
      %v958 = vrot.slane %v944, %v957
      %v959 = vcombine.low %v894, %v910
      %v960 = vcombine.high %v894, %v910
      %v962 = vunpack.c.l.s4 1934713408
      %v963 = vunpack.c.0.s8 %v962
      %v964 = vlaneseq
      %v965 = vshrl.u32 %v964, 7
      %v966 = vsub.s32 %v963, %v965
      %v967 = vrot.slane %v959, %v966
      %v969 = vunpack.c.l.s4 1934713408
      %v970 = vunpack.c.0.s8 %v969
      %v971 = vlaneseq
      %v972 = vshrl.u32 %v971, 7
      %v973 = vsub.s32 %v970, %v972
      %v974 = vrot.slane %v960, %v973
      %v975 = vcombine.low %v919, %v935
      %v976 = vcombine.high %v919, %v935
      %v978 = vunpack.c.l.s4 1934713408
      %v979 = vunpack.c.0.s8 %v978
      %v980 = vlaneseq
      %v981 = vshrl.u32 %v980, 7
      %v982 = vsub.s32 %v979, %v981
      %v983 = vrot.slane %v975, %v982
      %v985 = vunpack.c.l.s4 1934713408
      %v986 = vunpack.c.0.s8 %v985
      %v987 = vlaneseq
      %v988 = vshrl.u32 %v987, 7
      %v989 = vsub.s32 %v986, %v988
      %v990 = vrot.slane %v976, %v989
      %v991 = vcombine.low %v926, %v942
      %v992 = vcombine.high %v926, %v942
      %v994 = vunpack.c.l.s4 1934713408
      %v995 = vunpack.c.0.s8 %v994
      %v996 = vlaneseq
      %v997 = vshrl.u32 %v996, 7
      %v998 = vsub.s32 %v995, %v997
      %v999 = vrot.slane %v991, %v998
      %v1001 = vunpack.c.l.s4 1934713408
      %v1002 = vunpack.c.0.s8 %v1001
      %v1003 = vlaneseq
      %v1004 = vshrl.u32 %v1003, 7
      %v1005 = vsub.s32 %v1002, %v1004
      %v1006 = vrot.slane %v992, %v1005
      %v1007 = vcombine.low %v951, %v983
      %v1008 = vcombine.high %v951, %v983
      %v1009 = vcombine.low %v958, %v990
      %v1010 = vcombine.high %v958, %v990
      %v1011 = vcombine.low %v967, %v999
      %v1012 = vcombine.high %v967, %v999
      %v1013 = vcombine.low %v974, %v1006
      %v1014 = vcombine.high %v974, %v1006
      %1017 = vrot.lane.b32.xlu0 %v872, 64
      %v1018 = vpop.permute.xlu0 %1017
      %1019 = vrot.lane.b32.xlu0 %v1008, 64
      %v1020 = vpop.permute.xlu0 %1019
      %1025 = vrot.lane.b32.xlu0 %v874, 64
      %v1026 = vpop.permute.xlu0 %1025
      %1027 = vrot.lane.b32.xlu0 %v1010, 64
      %v1028 = vpop.permute.xlu0 %1027
      %1033 = vrot.lane.b32.xlu0 %v876, 64
      %v1034 = vpop.permute.xlu0 %1033
      %1035 = vrot.lane.b32.xlu0 %v1012, 64
      %v1036 = vpop.permute.xlu0 %1035
      %1041 = vrot.lane.b32.xlu0 %v878, 64
      %v1042 = vpop.permute.xlu0 %1041
      %1043 = vrot.lane.b32.xlu0 %v1014, 64
      %v1044 = vpop.permute.xlu0 %1043
      %v1047 = vsel %vm526, %v871, %v1018
      %v1048 = vsel %vm526, %v1007, %v1020
      %v1049 = vsel %vm526, %v873, %v1026
      %v1050 = vsel %vm526, %v1009, %v1028
      %v1051 = vsel %vm526, %v875, %v1034
      %v1052 = vsel %vm526, %v1011, %v1036
      %v1053 = vsel %vm526, %v877, %v1042
      %v1054 = vsel %vm526, %v1013, %v1044
      %1055 = vst [vmem:[%s177] sm:$0xff] %v1047
      %1056 = vst [vmem:[%s177 + $0x8] sm:$0xff] %v1049
      %1057 = vst [vmem:[%s177 + $0x10] sm:$0xff] %v1051
      %1058 = vst [vmem:[%s177 + $0x18] sm:$0xff] %v1053
      %1059 = vst [vmem:[%s177 + $0x20] sm:$0xff] %v1048
      %1060 = vst [vmem:[%s177 + $0x28] sm:$0xff] %v1050
      %1061 = vst [vmem:[%s177 + $0x30] sm:$0xff] %v1052
      %1062 = vst [vmem:[%s177 + $0x38] sm:$0xff] %v1054
      %s1063 = smul.u32 2, %s14
      %p1064 = scmp.lt.s32.totalorder %s1063, 3
      %s1065 = scalar_select %p1064, %s1063, 3
      %s1066 = smul.addr %s1065, 4
      %s1067 = smul.addr %s1066, 8
      %s1068 = scalar_lea.vmem %s3, %s1067
      // Predicated region
      $region33: #{head_top_forward.1} parent=31 // pred_check
        %p1069 = pneg %p100
      $region34: #{head_top_forward.1} parent=31 // pred_check_branch
        %1071 = sbr.rel (%p1069) target = $region36
      $region35: #{head_top_forward.1} parent=31 // pred_region
        %s1072 = smul.u32 2, %s14
      $region36: #{head_top_forward.1} parent=31 // pred_fallthru
        _
    $region32: #{head_top_forward.1} parent=5 // pred_fallthru
      _
    %p1073 = scmp.le.s32.totalorder 2, %s9
    // Predicated region
    $region37: #{head_top_forward.1} parent=5 // pred_check
      %p1074 = pneg %p1073
    $region38: #{head_top_forward.1} parent=5 // pred_check_branch
      %1076 = sbr.rel (%p1074) target = $region40
    $region39: #{head_top_forward.1} parent=5 // pred_region
      %s1077 = ssub.s32 %s9, 2
      // Predicated region
      $region41: #{head_top_forward.1} parent=39 // pred_check
        %p1078 = pneg %p106
      $region42: #{head_top_forward.1} parent=39 // pred_check_branch
        %1080 = sbr.rel (%p1078) target = $region44
      $region43: #{head_top_forward.1} parent=39 // pred_region
        %s1081 = smul.u32 2, %s15
        %p1082 = scmp.lt.s32.totalorder %s1081, 3
        %s1083 = scalar_select %p1082, %s1081, 3
        %s1084 = smul.addr %s1083, 4
        %s1085 = smul.addr %s1084, 8
        %s1086 = scalar_lea.vmem %s3, %s1085
      $region44: #{head_top_forward.1} parent=39 // pred_fallthru
        _
    $region40: #{head_top_forward.1} parent=5 // pred_fallthru
      _
  $region6: #{head_top_forward.1} parent=0 // loop_footer
    %s13 = sadd.s32 1, %s9
  $region7: #{head_top_forward.1} parent=0 // loop_footer_branch
    %8 = sbr.rel target = $region3
  $region8: #{head_top_forward.1} parent=0 // loop_exit
    _

</llo_original>
